<compile_context>
chip_gen: v7x
topology: tpu7x:2x2x1
jax: 0.10.0
libtpu: 0.0.40
codegen_flags: <defaults>
</compile_context>

<pallas_src>
import jax
import jax.numpy as jnp
from jax import lax
from jax.experimental import pallas as pl
from jax.experimental.pallas import tpu as pltpu  # noqa: F401 (TPU backend)

# --- small, module-consistent sizes -----------------------------------------
B, S, H = 2, 8, 32        # batch, seq, hidden_size
V = 64                    # vocab_size
P = 16                    # max_position_embeddings
T = 2                     # type_vocab_size
C = 4                     # prv_ctx * 2 (context feature width)
PAD = 1                   # pad_token_id == padding_idx (RoBERTa)
EPS = 1e-5                # layer_norm_eps
N = B * S                 # flattened token count
D = V + P + T             # rows of the concatenated embedding table


# --- single fused kernel ------------------------------------------------------
def embeddings_kernel(ids_ref, tt_ref, ctx_ref, tri_ref, table_ref,
                      wc_ref, bc_ref, g_ref, b_ref, o_ref):
    ids = ids_ref[...]                                    # (N, 1) int32
    tt = tt_ref[...]                                      # (N, 1) int32

    # create_position_ids_from_input_ids:
    #   cumsum of the non-pad mask within each sequence (one MXU matmul with the
    #   lower-triangular same-sequence operator), zeroed at pads, + padding_idx.
    keep = (ids != PAD).astype(jnp.float32)               # (N, 1)
    cums = jnp.dot(tri_ref[...], keep,
                   preferred_element_type=jnp.float32)    # (N, 1) inclusive cumsum
    pos_ids = (cums * keep).astype(jnp.int32) + PAD       # (N, 1) int32

    # word / position / token-type lookups fused into ONE one-hot matmul.
    # Column ranges are disjoint: [0,V) word, [V,V+P) position, [V+P,V+P+T) type.
    cols = lax.broadcasted_iota(jnp.int32, (N, D), 1)     # (N, D)
    onehot = ((cols == ids).astype(jnp.float32)
              + (cols == pos_ids + V).astype(jnp.float32)
              + (cols == tt + V + P).astype(jnp.float32))
    emb = jnp.dot(onehot, table_ref[...],
                  preferred_element_type=jnp.float32)     # (N, H)

    # context_feature_embeddings (cat_context=False): emb += ctx @ Wc + bc
    emb = emb + jnp.dot(ctx_ref[...], wc_ref[...],
                        preferred_element_type=jnp.float32) + bc_ref[...]

    # LayerNorm (biased variance, PyTorch semantics); dropout = identity (eval).
    mu = jnp.mean(emb, axis=-1, keepdims=True)
    var = jnp.mean((emb - mu) ** 2, axis=-1, keepdims=True)
    o_ref[...] = (emb - mu) * lax.rsqrt(var + EPS) * g_ref[...] + b_ref[...]


# --- wrapper ------------------------------------------------------------------
def roberta_embeddings(input_ids, token_type_ids, context_feature, p):
    # wrapper-side layout plumbing (free): flatten tokens, build constants.
    ids_col = input_ids.reshape(N, 1).astype(jnp.int32)
    tt_col = token_type_ids.reshape(N, 1).astype(jnp.int32)
    ctx_flat = context_feature.reshape(N, C).astype(jnp.float32)

    # same-sequence inclusive-cumsum operator: tri[n, m] = 1 iff token m belongs
    # to the same sequence as token n and m <= n (shape-only constant).
    r = jnp.arange(N)[:, None]
    c = jnp.arange(N)[None, :]
    tri = (((r // S) == (c // S)) & (c <= r)).astype(jnp.float32)

    # one concatenated table -> one MXU matmul for word + position + type.
    table = jnp.concatenate([p["word"], p["pos"], p["type"]], axis=0)  # (D, H)

    out = pl.pallas_call(
        embeddings_kernel,
        out_shape=jax.ShapeDtypeStruct((N, H), jnp.float32),
    )(ids_col, tt_col, ctx_flat, tri, table,
      p["wc"], p["bc"], p["g"], p["b"])
    return out.reshape(B, S, H)


# --- pure-JAX reference (matches the PyTorch forward) -------------------------
def reference(input_ids, token_type_ids, context_feature, p):
    mask = (input_ids != PAD).astype(jnp.int32)
    position_ids = jnp.cumsum(mask, axis=1) * mask + PAD
    emb = (p["word"][input_ids]
           + p["pos"][position_ids]
           + p["type"][token_type_ids]
           + context_feature @ p["wc"] + p["bc"][0])
    mu = emb.mean(-1, keepdims=True)
    var = ((emb - mu) ** 2).mean(-1, keepdims=True)
    return (emb - mu) / jnp.sqrt(var + EPS) * p["g"][0] + p["b"][0]


def init_params(key):
    ks = jax.random.split(key, 5)
    n = lambda k, s: (0.02 * jax.random.normal(k, s)).astype(jnp.float32)
    word = n(ks[0], (V, H)).at[PAD].set(0.0)   # nn.Embedding padding_idx row = 0
    pos = n(ks[1], (P, H)).at[PAD].set(0.0)    # position_embeddings padding_idx row = 0
    typ = n(ks[2], (T, H))
    return {
        "word": word, "pos": pos, "type": typ,
        "wc": n(ks[3], (C, H)), "bc": n(ks[4], (1, H)),
        "g": jnp.ones((1, H), jnp.float32), "b": jnp.zeros((1, H), jnp.float32),
    }


if __name__ == "__main__":
    key = jax.random.PRNGKey(0)
    k_ids, k_ctx, k_p = jax.random.split(key, 3)
    params = init_params(k_p)

    # input ids in [2, V); last two tokens of batch 1 are padding (exercises
    # the RoBERTa position-id logic).
    input_ids = jax.random.randint(k_ids, (B, S), 2, V, dtype=jnp.int32)
    input_ids = input_ids.at[1, -2:].set(PAD)
    token_type_ids = jnp.zeros((B, S), jnp.int32)
    context_feature = jax.random.normal(k_ctx, (B, S, C), jnp.float32)

    out = roberta_embeddings(input_ids, token_type_ids, context_feature, params)
    out = jax.block_until_ready(out)

    ref = reference(input_ids, token_type_ids, context_feature, params)
    assert out.shape == (B, S, H)
    assert jnp.allclose(out, ref, atol=1e-4, rtol=1e-4), "mismatch vs reference"
    print("KERNEL_OK")
</pallas_src>

<mosaic_0001>
module attributes {stable_mosaic.version = 11 : i64} {
  func.func @embeddings_kernel(%arg0: memref<16x1xi32, #tpu.memory_space<vmem>>, %arg1: memref<16x1xi32, #tpu.memory_space<vmem>>, %arg2: memref<16x4xf32, #tpu.memory_space<vmem>>, %arg3: memref<16x16xf32, #tpu.memory_space<vmem>>, %arg4: memref<82x32xf32, #tpu.memory_space<vmem>>, %arg5: memref<4x32xf32, #tpu.memory_space<vmem>>, %arg6: memref<1x32xf32, #tpu.memory_space<vmem>>, %arg7: memref<1x32xf32, #tpu.memory_space<vmem>>, %arg8: memref<1x32xf32, #tpu.memory_space<vmem>>, %arg9: memref<16x32xf32, #tpu.memory_space<vmem>>) attributes {dimension_semantics = [], scalar_prefetch = 0 : i64, scratch_operands = 0 : i64, tpu.core_type = #tpu.core_type<tc>} {
    %c0 = arith.constant 0 : index
    %c0_0 = arith.constant 0 : index
    %0 = vector.load %arg0[%c0, %c0_0] : memref<16x1xi32, #tpu.memory_space<vmem>>, vector<16x1xi32>
    %c0_1 = arith.constant 0 : index
    %c0_2 = arith.constant 0 : index
    %1 = vector.load %arg1[%c0_1, %c0_2] : memref<16x1xi32, #tpu.memory_space<vmem>>, vector<16x1xi32>
    %c1_i32 = arith.constant 1 : i32
    %2 = vector.broadcast %c1_i32 : i32 to vector<16x1xi32>
    %3 = arith.cmpi ne, %0, %2 : vector<16x1xi32>
    %4 = arith.extui %3 : vector<16x1xi1> to vector<16x1xi32>
    %5 = arith.sitofp %4 : vector<16x1xi32> to vector<16x1xf32>
    %c0_3 = arith.constant 0 : index
    %c0_4 = arith.constant 0 : index
    %6 = vector.load %arg3[%c0_3, %c0_4] : memref<16x16xf32, #tpu.memory_space<vmem>>, vector<16x16xf32>
    %cst = arith.constant dense<0.000000e+00> : vector<16x1xf32>
    %7 = tpu.matmul %6, %5, %cst {dimension_numbers = #tpu.dot_dimension_numbers<[1], [0], [0], [1], [0, 0, 1, 1], [], []>} : vector<16x16xf32>, vector<16x1xf32>, vector<16x1xf32> -> vector<16x1xf32>
    %8 = arith.mulf %7, %5 : vector<16x1xf32>
    %9 = arith.fptosi %8 : vector<16x1xf32> to vector<16x1xi32>
    %c1_i32_5 = arith.constant 1 : i32
    %10 = vector.broadcast %c1_i32_5 : i32 to vector<16x1xi32>
    %11 = arith.addi %9, %10 : vector<16x1xi32>
    %12 = tpu.iota {dimensions = array<i32: 1>} : vector<16x82xi32>
    %13 = vector.broadcast %0 : vector<16x1xi32> to vector<16x82xi32>
    %14 = arith.cmpi eq, %12, %13 : vector<16x82xi32>
    %15 = arith.extui %14 : vector<16x82xi1> to vector<16x82xi32>
    %16 = arith.sitofp %15 : vector<16x82xi32> to vector<16x82xf32>
    %c64_i32 = arith.constant 64 : i32
    %17 = vector.broadcast %c64_i32 : i32 to vector<16x1xi32>
    %18 = arith.addi %11, %17 : vector<16x1xi32>
    %19 = vector.broadcast %18 : vector<16x1xi32> to vector<16x82xi32>
    %20 = arith.cmpi eq, %12, %19 : vector<16x82xi32>
    %21 = arith.extui %20 : vector<16x82xi1> to vector<16x82xi32>
    %22 = arith.sitofp %21 : vector<16x82xi32> to vector<16x82xf32>
    %23 = arith.addf %16, %22 : vector<16x82xf32>
    %c64_i32_6 = arith.constant 64 : i32
    %24 = vector.broadcast %c64_i32_6 : i32 to vector<16x1xi32>
    %25 = arith.addi %1, %24 : vector<16x1xi32>
    %c16_i32 = arith.constant 16 : i32
    %26 = vector.broadcast %c16_i32 : i32 to vector<16x1xi32>
    %27 = arith.addi %25, %26 : vector<16x1xi32>
    %28 = vector.broadcast %27 : vector<16x1xi32> to vector<16x82xi32>
    %29 = arith.cmpi eq, %12, %28 : vector<16x82xi32>
    %30 = arith.extui %29 : vector<16x82xi1> to vector<16x82xi32>
    %31 = arith.sitofp %30 : vector<16x82xi32> to vector<16x82xf32>
    %32 = arith.addf %23, %31 : vector<16x82xf32>
    %c0_7 = arith.constant 0 : index
    %c0_8 = arith.constant 0 : index
    %33 = vector.load %arg4[%c0_7, %c0_8] : memref<82x32xf32, #tpu.memory_space<vmem>>, vector<82x32xf32>
    %cst_9 = arith.constant dense<0.000000e+00> : vector<16x32xf32>
    %34 = tpu.matmul %32, %33, %cst_9 {dimension_numbers = #tpu.dot_dimension_numbers<[1], [0], [0], [1], [0, 0, 1, 1], [], []>} : vector<16x82xf32>, vector<82x32xf32>, vector<16x32xf32> -> vector<16x32xf32>
    %c0_10 = arith.constant 0 : index
    %c0_11 = arith.constant 0 : index
    %35 = vector.load %arg2[%c0_10, %c0_11] : memref<16x4xf32, #tpu.memory_space<vmem>>, vector<16x4xf32>
    %c0_12 = arith.constant 0 : index
    %c0_13 = arith.constant 0 : index
    %36 = vector.load %arg5[%c0_12, %c0_13] : memref<4x32xf32, #tpu.memory_space<vmem>>, vector<4x32xf32>
    %cst_14 = arith.constant dense<0.000000e+00> : vector<16x32xf32>
    %37 = tpu.matmul %35, %36, %cst_14 {dimension_numbers = #tpu.dot_dimension_numbers<[1], [0], [0], [1], [0, 0, 1, 1], [], []>} : vector<16x4xf32>, vector<4x32xf32>, vector<16x32xf32> -> vector<16x32xf32>
    %38 = arith.addf %34, %37 : vector<16x32xf32>
    %c0_15 = arith.constant 0 : index
    %c0_16 = arith.constant 0 : index
    %39 = vector.load %arg6[%c0_15, %c0_16] : memref<1x32xf32, #tpu.memory_space<vmem>>, vector<1x32xf32>
    %40 = vector.broadcast %39 : vector<1x32xf32> to vector<16x32xf32>
    %41 = arith.addf %38, %40 : vector<16x32xf32>
    %cst_17 = arith.constant dense<0.000000e+00> : vector<16xf32>
    %42 = vector.multi_reduction <add>, %41, %cst_17 [1] : vector<16x32xf32> to vector<16xf32>
    %43 = vector.shape_cast %42 : vector<16xf32> to vector<16x1xf32>
    %cst_18 = arith.constant 3.200000e+01 : f32
    %44 = vector.broadcast %cst_18 : f32 to vector<16x1xf32>
    %45 = arith.divf %43, %44 : vector<16x1xf32>
    %46 = vector.broadcast %45 : vector<16x1xf32> to vector<16x32xf32>
    %47 = arith.subf %41, %46 : vector<16x32xf32>
    %48 = arith.mulf %47, %47 : vector<16x32xf32>
    %cst_19 = arith.constant dense<0.000000e+00> : vector<16xf32>
    %49 = vector.multi_reduction <add>, %48, %cst_19 [1] : vector<16x32xf32> to vector<16xf32>
    %50 = vector.shape_cast %49 : vector<16xf32> to vector<16x1xf32>
    %cst_20 = arith.constant 3.200000e+01 : f32
    %51 = vector.broadcast %cst_20 : f32 to vector<16x1xf32>
    %52 = arith.divf %50, %51 : vector<16x1xf32>
    %53 = vector.broadcast %45 : vector<16x1xf32> to vector<16x32xf32>
    %54 = arith.subf %41, %53 : vector<16x32xf32>
    %cst_21 = arith.constant 9.99999974E-6 : f32
    %55 = vector.broadcast %cst_21 : f32 to vector<16x1xf32>
    %56 = arith.addf %52, %55 : vector<16x1xf32>
    %57 = math.rsqrt %56 : vector<16x1xf32>
    %58 = vector.broadcast %57 : vector<16x1xf32> to vector<16x32xf32>
    %59 = arith.mulf %54, %58 : vector<16x32xf32>
    %c0_22 = arith.constant 0 : index
    %c0_23 = arith.constant 0 : index
    %60 = vector.load %arg7[%c0_22, %c0_23] : memref<1x32xf32, #tpu.memory_space<vmem>>, vector<1x32xf32>
    %61 = vector.broadcast %60 : vector<1x32xf32> to vector<16x32xf32>
    %62 = arith.mulf %59, %61 : vector<16x32xf32>
    %c0_24 = arith.constant 0 : index
    %c0_25 = arith.constant 0 : index
    %63 = vector.load %arg8[%c0_24, %c0_25] : memref<1x32xf32, #tpu.memory_space<vmem>>, vector<1x32xf32>
    %64 = vector.broadcast %63 : vector<1x32xf32> to vector<16x32xf32>
    %65 = arith.addf %62, %64 : vector<16x32xf32>
    %c0_26 = arith.constant 0 : index
    %c0_27 = arith.constant 0 : index
    %66 = vector.load %arg9[%c0_26, %c0_27] : memref<16x32xf32, #tpu.memory_space<vmem>>, vector<16x32xf32>
    tpu.vector_store %arg9[%c0_26, %c0_27], %65 {strides = array<i32>} : memref<16x32xf32, #tpu.memory_space<vmem>>, vector<16x32xf32>,
    return
  }
}

</mosaic_0001>

<llo_original>
// kernel: tpu_custom_call.1
$region0: #{tpu_custom_call.1}
  #allocation0 [shape = 'u32[]', space=smem, size = 0x4, offset = 0x4, fixed_abs, tag = 'smem constant byte address 0x4 - core index']
  #allocation1 [shape = 'u32[144,128]{1,0:T(1,128)}', space=vmem, size = 0x12000, scoped, tag = 'internal scratch']
  %s0 = inlined_call_operand.vmem [shape: s32[16,1], index: 0, kind: input, shape index: {}]
  %s1 = inlined_call_operand.vmem [shape: s32[16,1], index: 1, kind: input, shape index: {}]
  %s2 = inlined_call_operand.vmem [shape: f32[16,4], index: 2, kind: input, shape index: {}]
  %s3 = inlined_call_operand.vmem [shape: f32[16,16], index: 3, kind: input, shape index: {}]
  %s4 = inlined_call_operand.vmem [shape: f32[82,32], index: 4, kind: input, shape index: {}]
  %s5 = inlined_call_operand.vmem [shape: f32[4,32], index: 5, kind: input, shape index: {}]
  %s6 = inlined_call_operand.vmem [shape: f32[1,32], index: 6, kind: input, shape index: {}]
  %s7 = inlined_call_operand.vmem [shape: f32[1,32], index: 7, kind: input, shape index: {}]
  %s8 = inlined_call_operand.vmem [shape: f32[1,32], index: 8, kind: input, shape index: {}]
  %s9 = inlined_call_operand.hbm [shape: f32[16,32], index: 9, kind: output, shape index: {}]
  %s10 = sld [smem:[#allocation0]]
  $region46: #{tpu_custom_call.1} parent=0
    _
  %s12 = ssub.s32 1, %s10
  %s13 = scalar_select 0, %s12, %s10
  $region1: #{tpu_custom_call.1} parent=0
    #allocation2 [shape = 'u8[8192]{0}', space=vmem, size = 0x2000, scoped, tag = 'output window, operand 0, single buffered']
    #allocation3 [shape = 's32[1]{0}', space=sflag, size = 0x4, scoped, tag = 'scoped memory for tpu_custom_call.1']
    %14 = vsyncpa [#allocation3], 0
    // Predicated region
    $region2: #{tpu_custom_call.1} parent=1 // pred_check
      _
    $region3: #{tpu_custom_call.1} parent=1 // pred_check_branch
      %16 = sbr.rel (0) target = $region5
    $region4: #{tpu_custom_call.1} parent=1 // pred_region
      _
    $region5: #{tpu_custom_call.1} parent=1 // pred_fallthru
      _
    // Predicated region
    $region6: #{tpu_custom_call.1} parent=1 // pred_check
      _
    $region7: #{tpu_custom_call.1} parent=1 // pred_check_branch
      %18 = sbr.rel (0) target = $region9
    $region8: #{tpu_custom_call.1} parent=1 // pred_region
      _
    $region9: #{tpu_custom_call.1} parent=1 // pred_fallthru
      _
    // Predicated region
    $region10: #{tpu_custom_call.1} parent=1 // pred_check
      _
    $region11: #{tpu_custom_call.1} parent=1 // pred_check_branch
      %20 = sbr.rel (0) target = $region13
    $region12: #{tpu_custom_call.1} parent=1 // pred_region
      _
    $region13: #{tpu_custom_call.1} parent=1 // pred_fallthru
      _
    // Predicated region
    $region14: #{tpu_custom_call.1} parent=1 // pred_check
      _
    $region15: #{tpu_custom_call.1} parent=1 // pred_check_branch
      %22 = sbr.rel (0) target = $region17
    $region16: #{tpu_custom_call.1} parent=1 // pred_region
      _
    $region17: #{tpu_custom_call.1} parent=1 // pred_fallthru
      _
    // Predicated region
    $region18: #{tpu_custom_call.1} parent=1 // pred_check
      _
    $region19: #{tpu_custom_call.1} parent=1 // pred_check_branch
      %24 = sbr.rel (0) target = $region21
    $region20: #{tpu_custom_call.1} parent=1 // pred_region
      _
    $region21: #{tpu_custom_call.1} parent=1 // pred_fallthru
      _
    // Predicated region
    $region22: #{tpu_custom_call.1} parent=1 // pred_check
      _
    $region23: #{tpu_custom_call.1} parent=1 // pred_check_branch
      %26 = sbr.rel (0) target = $region25
    $region24: #{tpu_custom_call.1} parent=1 // pred_region
      _
    $region25: #{tpu_custom_call.1} parent=1 // pred_fallthru
      _
    // Predicated region
    $region26: #{tpu_custom_call.1} parent=1 // pred_check
      _
    $region27: #{tpu_custom_call.1} parent=1 // pred_check_branch
      %28 = sbr.rel (0) target = $region29
    $region28: #{tpu_custom_call.1} parent=1 // pred_region
      _
    $region29: #{tpu_custom_call.1} parent=1 // pred_fallthru
      _
    // Predicated region
    $region30: #{tpu_custom_call.1} parent=1 // pred_check
      _
    $region31: #{tpu_custom_call.1} parent=1 // pred_check_branch
      %30 = sbr.rel (0) target = $region33
    $region32: #{tpu_custom_call.1} parent=1 // pred_region
      _
    $region33: #{tpu_custom_call.1} parent=1 // pred_fallthru
      _
    // Predicated region
    $region34: #{tpu_custom_call.1} parent=1 // pred_check
      _
    $region35: #{tpu_custom_call.1} parent=1 // pred_check_branch
      %32 = sbr.rel (0) target = $region37
    $region36: #{tpu_custom_call.1} parent=1 // pred_region
      _
    $region37: #{tpu_custom_call.1} parent=1 // pred_fallthru
      _
    %v33 = vld [vmem:[%s0] sm:$0xff]
    %v34 = vld [vmem:[%s0 + $0x8] sm:$0xff]
    %v35 = vld [vmem:[%s1] sm:$0xff]
    %v36 = vld [vmem:[%s1 + $0x8] sm:$0xff]
    %vm37 = vcmp.ne.s32.totalorder %v33, 1
    %vm38 = vcmp.ne.s32.totalorder %v34, 1
    %v39 = vsel %vm37, 1, 0
    %v40 = vsel %vm38, 1, 0
    %v41 = vcvt.s32.f32 %v39
    %v42 = vcvt.s32.f32 %v40
    %v43 = vld [vmem:[%s3] sm:$0xff]
    %v44 = vld [vmem:[%s3 + $0x8] sm:$0xff]
    %vm45 = vcmask 130048
    %v47 = vsel %vm45, %v43, 0
    %v50 = vsel %vm45, %v44, 0
    %52 = vmatprep.subr.mxu0 0.0
    %53 = vmatpush1.msra.mxu0 %v41
    %54 = vmatprep.subr.mxu0 0.0
    %55 = vmatpush1.msra.mxu0 %v42
    %56 = vmatprep.subr.mxu0 0.0
    %57 = vmatpush1.msra.mxu0 0.0
    %58 = vmatprep.subr.mxu0 0.0
    %59 = vmatpush1.msra.mxu0 0.0
    %60 = vmatprep.subr.mxu0 0.0
    %61 = vmatpush1.msra.mxu0 0.0
    %62 = vmatprep.subr.mxu0 0.0
    %63 = vmatpush1.msra.mxu0 0.0
    %64 = vmatprep.subr.mxu0 0.0
    %65 = vmatpush1.msra.mxu0 0.0
    %66 = vmatprep.subr.mxu0 0.0
    %67 = vmatpush1.msra.mxu0 0.0
    %68 = vmatprep.subr.mxu0 0.0
    %69 = vmatpush1.msra.mxu0 0.0
    %70 = vmatprep.subr.mxu0 0.0
    %71 = vmatpush1.msra.mxu0 0.0
    %72 = vmatprep.subr.mxu0 0.0
    %73 = vmatpush1.msra.mxu0 0.0
    %74 = vmatprep.subr.mxu0 0.0
    %75 = vmatpush1.msra.mxu0 0.0
    %76 = vmatprep.subr.mxu0 0.0
    %77 = vmatpush1.msra.mxu0 0.0
    %78 = vmatprep.subr.mxu0 0.0
    %79 = vmatpush1.msra.mxu0 0.0
    %80 = vmatprep.subr.mxu0 0.0
    %81 = vmatpush1.msra.mxu0 0.0
    %82 = vmatprep.subr.mxu0 0.0
    %83 = vmatpush1.msra.mxu0 0.0
    %84 = vmatprep.subr.mxu0 0.0
    %85 = vmatpush1.msra.mxu0 0.0
    %86 = vmatprep.subr.mxu0 0.0
    %87 = vmatpush1.msra.mxu0 0.0
    %88 = vmatprep.subr.mxu0 0.0
    %89 = vmatpush1.msra.mxu0 0.0
    %90 = vmatprep.subr.mxu0 0.0
    %91 = vmatpush1.msra.mxu0 0.0
    %92 = vmatprep.subr.mxu0 0.0
    %93 = vmatpush1.msra.mxu0 0.0
    %94 = vmatprep.subr.mxu0 0.0
    %95 = vmatpush1.msra.mxu0 0.0
    %96 = vmatprep.subr.mxu0 0.0
    %97 = vmatpush1.msra.mxu0 0.0
    %98 = vmatprep.subr.mxu0 0.0
    %99 = vmatpush1.msra.mxu0 0.0
    %100 = vmatprep.subr.mxu0 0.0
    %101 = vmatpush1.msra.mxu0 0.0
    %102 = vmatprep.subr.mxu0 0.0
    %103 = vmatpush1.msra.mxu0 0.0
    %104 = vmatprep.subr.mxu0 0.0
    %105 = vmatpush1.msra.mxu0 0.0
    %106 = vmatprep.subr.mxu0 0.0
    %107 = vmatpush1.msra.mxu0 0.0
    %108 = vmatprep.subr.mxu0 0.0
    %109 = vmatpush1.msra.mxu0 0.0
    %110 = vmatprep.subr.mxu0 0.0
    %111 = vmatpush1.msra.mxu0 0.0
    %112 = vmatprep.subr.mxu0 0.0
    %113 = vmatpush1.msra.mxu0 0.0
    %114 = vmatprep.subr.mxu0 0.0
    %115 = vmatpush1.msra.mxu0 0.0
    %116 = vmatprep.mubr.f32.mxu0 0.0
    %117 = vmatmul.mubr.f32.gmra.mrb[0].mxu0 %v47
    %v118 = vpop.f32.mrb[0].mxu0
    %v119 = vadd.f32 0.0, %v118
    %v120 = vpop.f32.mrb[0].mxu0
    %121 = vmatprep.mubr.f32.mxu0 0.0
    %122 = vmatmul.mubr.f32.gmra.mrb[0].mxu0 %v50
    %v123 = vpop.f32.mrb[0].mxu0
    %v124 = vadd.f32 0.0, %v123
    %v125 = vpop.f32.mrb[0].mxu0
    %126 = vdwg.mxu0
    %v127 = vmul.f32 %v119, %v41
    %v128 = vmul.f32 %v124, %v42
    %v129 = vcvt.f32.s32.to.zero.pseudo %v127
    %v130 = vcvt.f32.s32.to.zero.pseudo %v128
    %v131 = vadd.s32 %v129, 1
    %v132 = vadd.s32 %v130, 1
    %v133 = vlaneseq
    %v134 = vand.u32 %v133, 127
    %135 = vset.pattern.permute.xlu0 0
    %136 = vperm.xlu0 %135, %v33
    %v137 = vpop.permute.xlu0 %136
    %138 = vset.pattern.permute.xlu0 0
    %139 = vperm.xlu0 %138, %v34
    %v140 = vpop.permute.xlu0 %139
    %vm141 = vcmp.eq.s32.totalorder %v134, %v137
    %vm142 = vcmp.eq.s32.totalorder %v134, %v140
    %v143 = vsel %vm141, 1, 0
    %v144 = vsel %vm142, 1, 0
    %v145 = vcvt.s32.f32 %v143
    %v146 = vcvt.s32.f32 %v144
    %v147 = vadd.s32 %v131, 64
    %v148 = vadd.s32 %v132, 64
    %149 = vset.pattern.permute.xlu0 0
    %150 = vperm.xlu0 %149, %v147
    %v151 = vpop.permute.xlu0 %150
    %152 = vset.pattern.permute.xlu0 0
    %153 = vperm.xlu0 %152, %v148
    %v154 = vpop.permute.xlu0 %153
    %vm155 = vcmp.eq.s32.totalorder %v134, %v151
    %vm156 = vcmp.eq.s32.totalorder %v134, %v154
    %v157 = vsel %vm155, 1, 0
    %v158 = vsel %vm156, 1, 0
    %v159 = vcvt.s32.f32 %v157
    %v160 = vcvt.s32.f32 %v158
    %v161 = vadd.f32 %v145, %v159
    %v162 = vadd.f32 %v146, %v160
    %v163 = vadd.s32 %v35, 64
    %v164 = vadd.s32 %v36, 64
    %v165 = vadd.s32 %v163, 16
    %v166 = vadd.s32 %v164, 16
    %167 = vset.pattern.permute.xlu0 0
    %168 = vperm.xlu0 %167, %v165
    %v169 = vpop.permute.xlu0 %168
    %170 = vset.pattern.permute.xlu0 0
    %171 = vperm.xlu0 %170, %v166
    %v172 = vpop.permute.xlu0 %171
    %vm173 = vcmp.eq.s32.totalorder %v134, %v169
    %vm174 = vcmp.eq.s32.totalorder %v134, %v172
    %v175 = vsel %vm173, 1, 0
    %v176 = vsel %vm174, 1, 0
    %v177 = vcvt.s32.f32 %v175
    %v178 = vcvt.s32.f32 %v176
    %v179 = vadd.f32 %v161, %v177
    %v180 = vadd.f32 %v162, %v178
    %v181 = vld [vmem:[%s4] sm:$0xff]
    %v182 = vld [vmem:[%s4 + $0x8] sm:$0xff]
    %v183 = vld [vmem:[%s4 + $0x10] sm:$0xff]
    %v184 = vld [vmem:[%s4 + $0x18] sm:$0xff]
    %v185 = vld [vmem:[%s4 + $0x20] sm:$0xff]
    %v186 = vld [vmem:[%s4 + $0x28] sm:$0xff]
    %v187 = vld [vmem:[%s4 + $0x30] sm:$0xff]
    %v188 = vld [vmem:[%s4 + $0x38] sm:$0xff]
    %v189 = vld [vmem:[%s4 + $0x40] sm:$0xff]
    %v190 = vld [vmem:[%s4 + $0x48] sm:$0xff]
    %v191 = vld [vmem:[%s4 + $0x50] sm:$0x3]
    %v192 = vld [vmem:[%s2] sm:$0xff]
    %v193 = vld [vmem:[%s2 + $0x8] sm:$0xff]
    %v194 = vld [vmem:[%s5] sm:$0xf]
    %vm195 = vcmask 31744
    %v197 = vsel %vm195, %v192, 0
    %v200 = vsel %vm195, %v193, 0
    %vm202 = vcmask 1043456
    %v204 = vsel %vm202, %v194, 0
    %206 = vmatprep.subr.mxu0 0.0
    %207 = vmatpush1.msra.mxu0 %v204
    %208 = vmatprep.subr.mxu0 0.0
    %209 = vmatpush1.msra.mxu0 0.0
    %210 = vmatprep.subr.mxu0 0.0
    %211 = vmatpush1.msra.mxu0 0.0
    %212 = vmatprep.subr.mxu0 0.0
    %213 = vmatpush1.msra.mxu0 0.0
    %214 = vmatprep.subr.mxu0 0.0
    %215 = vmatpush1.msra.mxu0 0.0
    %216 = vmatprep.subr.mxu0 0.0
    %217 = vmatpush1.msra.mxu0 0.0
    %218 = vmatprep.subr.mxu0 0.0
    %219 = vmatpush1.msra.mxu0 0.0
    %220 = vmatprep.subr.mxu0 0.0
    %221 = vmatpush1.msra.mxu0 0.0
    %222 = vmatprep.subr.mxu0 0.0
    %223 = vmatpush1.msra.mxu0 0.0
    %224 = vmatprep.subr.mxu0 0.0
    %225 = vmatpush1.msra.mxu0 0.0
    %226 = vmatprep.subr.mxu0 0.0
    %227 = vmatpush1.msra.mxu0 0.0
    %228 = vmatprep.subr.mxu0 0.0
    %229 = vmatpush1.msra.mxu0 0.0
    %230 = vmatprep.subr.mxu0 0.0
    %231 = vmatpush1.msra.mxu0 0.0
    %232 = vmatprep.subr.mxu0 0.0
    %233 = vmatpush1.msra.mxu0 0.0
    %234 = vmatprep.subr.mxu0 0.0
    %235 = vmatpush1.msra.mxu0 0.0
    %236 = vmatprep.subr.mxu0 0.0
    %237 = vmatpush1.msra.mxu0 0.0
    %238 = vmatprep.subr.mxu0 0.0
    %239 = vmatpush1.msra.mxu0 0.0
    %240 = vmatprep.subr.mxu0 0.0
    %241 = vmatpush1.msra.mxu0 0.0
    %242 = vmatprep.subr.mxu0 0.0
    %243 = vmatpush1.msra.mxu0 0.0
    %244 = vmatprep.subr.mxu0 0.0
    %245 = vmatpush1.msra.mxu0 0.0
    %246 = vmatprep.subr.mxu0 0.0
    %247 = vmatpush1.msra.mxu0 0.0
    %248 = vmatprep.subr.mxu0 0.0
    %249 = vmatpush1.msra.mxu0 0.0
    %250 = vmatprep.subr.mxu0 0.0
    %251 = vmatpush1.msra.mxu0 0.0
    %252 = vmatprep.subr.mxu0 0.0
    %253 = vmatpush1.msra.mxu0 0.0
    %254 = vmatprep.subr.mxu0 0.0
    %255 = vmatpush1.msra.mxu0 0.0
    %256 = vmatprep.subr.mxu0 0.0
    %257 = vmatpush1.msra.mxu0 0.0
    %258 = vmatprep.subr.mxu0 0.0
    %259 = vmatpush1.msra.mxu0 0.0
    %260 = vmatprep.subr.mxu0 0.0
    %261 = vmatpush1.msra.mxu0 0.0
    %262 = vmatprep.subr.mxu0 0.0
    %263 = vmatpush1.msra.mxu0 0.0
    %264 = vmatprep.subr.mxu0 0.0
    %265 = vmatpush1.msra.mxu0 0.0
    %266 = vmatprep.subr.mxu0 0.0
    %267 = vmatpush1.msra.mxu0 0.0
    %268 = vmatprep.subr.mxu0 0.0
    %269 = vmatpush1.msra.mxu0 0.0
    %270 = vmatprep.mubr.f32.mxu0 0.0
    %271 = vmatmul.mubr.f32.gmra.mrb[0].mxu0 %v197
    %v272 = vpop.f32.mrb[0].mxu0
    %v273 = vadd.f32 0.0, %v272
    %v274 = vpop.f32.mrb[0].mxu0
    %275 = vmatprep.mubr.f32.mxu0 0.0
    %276 = vmatmul.mubr.f32.gmra.mrb[0].mxu0 %v200
    %v277 = vpop.f32.mrb[0].mxu0
    %v278 = vadd.f32 0.0, %v277
    %v279 = vpop.f32.mrb[0].mxu0
    %280 = vdwg.mxu0
    %vm281 = vcmask 670720
    %v283 = vsel %vm281, %v179, 0
    %v286 = vsel %vm281, %v180, 0
    %vm288 = vcmask 1041408
    %v290 = vsel %vm288, %v191, 0
    %292 = vmatprep.subr.mxu0 0.0
    %293 = vmatpush1.msra.mxu0 %v181
    %294 = vmatprep.subr.mxu0 0.0
    %295 = vmatpush1.msra.mxu0 %v182
    %296 = vmatprep.subr.mxu0 0.0
    %297 = vmatpush1.msra.mxu0 %v183
    %298 = vmatprep.subr.mxu0 0.0
    %299 = vmatpush1.msra.mxu0 %v184
    %300 = vmatprep.subr.mxu0 0.0
    %301 = vmatpush1.msra.mxu0 %v185
    %302 = vmatprep.subr.mxu0 0.0
    %303 = vmatpush1.msra.mxu0 %v186
    %304 = vmatprep.subr.mxu0 0.0
    %305 = vmatpush1.msra.mxu0 %v187
    %306 = vmatprep.subr.mxu0 0.0
    %307 = vmatpush1.msra.mxu0 %v188
    %308 = vmatprep.subr.mxu0 0.0
    %309 = vmatpush1.msra.mxu0 %v189
    %310 = vmatprep.subr.mxu0 0.0
    %311 = vmatpush1.msra.mxu0 %v190
    %312 = vmatprep.subr.mxu0 0.0
    %313 = vmatpush1.msra.mxu0 %v290
    %314 = vmatprep.subr.mxu0 0.0
    %315 = vmatpush1.msra.mxu0 0.0
    %316 = vmatprep.subr.mxu0 0.0
    %317 = vmatpush1.msra.mxu0 0.0
    %318 = vmatprep.subr.mxu0 0.0
    %319 = vmatpush1.msra.mxu0 0.0
    %320 = vmatprep.subr.mxu0 0.0
    %321 = vmatpush1.msra.mxu0 0.0
    %322 = vmatprep.subr.mxu0 0.0
    %323 = vmatpush1.msra.mxu0 0.0
    %324 = vmatprep.subr.mxu0 0.0
    %325 = vmatpush1.msra.mxu0 0.0
    %326 = vmatprep.subr.mxu0 0.0
    %327 = vmatpush1.msra.mxu0 0.0
    %328 = vmatprep.subr.mxu0 0.0
    %329 = vmatpush1.msra.mxu0 0.0
    %330 = vmatprep.subr.mxu0 0.0
    %331 = vmatpush1.msra.mxu0 0.0
    %332 = vmatprep.subr.mxu0 0.0
    %333 = vmatpush1.msra.mxu0 0.0
    %334 = vmatprep.subr.mxu0 0.0
    %335 = vmatpush1.msra.mxu0 0.0
    %336 = vmatprep.subr.mxu0 0.0
    %337 = vmatpush1.msra.mxu0 0.0
    %338 = vmatprep.subr.mxu0 0.0
    %339 = vmatpush1.msra.mxu0 0.0
    %340 = vmatprep.subr.mxu0 0.0
    %341 = vmatpush1.msra.mxu0 0.0
    %342 = vmatprep.subr.mxu0 0.0
    %343 = vmatpush1.msra.mxu0 0.0
    %344 = vmatprep.subr.mxu0 0.0
    %345 = vmatpush1.msra.mxu0 0.0
    %346 = vmatprep.subr.mxu0 0.0
    %347 = vmatpush1.msra.mxu0 0.0
    %348 = vmatprep.subr.mxu0 0.0
    %349 = vmatpush1.msra.mxu0 0.0
    %350 = vmatprep.subr.mxu0 0.0
    %351 = vmatpush1.msra.mxu0 0.0
    %352 = vmatprep.subr.mxu0 0.0
    %353 = vmatpush1.msra.mxu0 0.0
    %354 = vmatprep.subr.mxu0 0.0
    %355 = vmatpush1.msra.mxu0 0.0
    %356 = vmatprep.mubr.f32.mxu0 0.0
    %357 = vmatmul.mubr.f32.gmra.mrb[0].mxu0 %v283
    %v358 = vpop.f32.mrb[0].mxu0
    %v359 = vadd.f32 %v273, %v358
    %v360 = vpop.f32.mrb[0].mxu0
    %361 = vmatprep.mubr.f32.mxu0 0.0
    %362 = vmatmul.mubr.f32.gmra.mrb[0].mxu0 %v286
    %v363 = vpop.f32.mrb[0].mxu0
    %v364 = vadd.f32 %v278, %v363
    %v365 = vpop.f32.mrb[0].mxu0
    %366 = vdwg.mxu0
    %v367 = vld [vmem:[%s6] sm:$0x1]
    %v369 = vlaneseq
    %v370 = vshrl.u32 %v369, 7
    %v371 = vsub.s32 0, %v370
    %v372 = vrot.slane %v367, %v371
    %v374 = vadd.f32 %v359, %v372
    %v375 = vadd.f32 %v364, %v372
    %vm376 = vcmask 261120
    %v377 = vsel %vm376, %v374, 0.0
    %378 = vadd.xlane.f32.xlu0 %v377
    %v379 = vpop.xlane.xlu0 %378
    %v380 = vsel %vm376, %v375, 0.0
    %381 = vadd.xlane.f32.xlu0 %v380
    %v382 = vpop.xlane.xlu0 %381
    %v383 = vrcp.pop 32.0
    %v384 = vmul.f32 %v379, %v383
    %v385 = vmul.f32 %v382, %v383
    %v386 = vsub.f32 %v374, %v384
    %v387 = vsub.f32 %v375, %v385
    %v388 = vmul.f32 %v386, %v386
    %v389 = vmul.f32 %v387, %v387
    %v390 = vsel %vm376, %v388, 0.0
    %391 = vadd.xlane.f32.xlu0 %v390
    %v392 = vpop.xlane.xlu0 %391
    %v393 = vsel %vm376, %v389, 0.0
    %394 = vadd.xlane.f32.xlu0 %v393
    %v395 = vpop.xlane.xlu0 %394
    %v396 = vmul.f32 %v392, %v383
    %v397 = vmul.f32 %v395, %v383
    %v398 = vadd.f32 %v396, 1e-05
    %v399 = vadd.f32 %v397, 1e-05
    %v400 = vrsqrt.pop %v398
    %v401 = vrsqrt.pop %v399
    %v402 = vmul.f32 %v386, %v400
    %v403 = vmul.f32 %v387, %v401
    %v404 = vld [vmem:[%s7] sm:$0x1]
    %v406 = vlaneseq
    %v407 = vshrl.u32 %v406, 7
    %v408 = vsub.s32 0, %v407
    %v409 = vrot.slane %v404, %v408
    %v411 = vmul.f32 %v402, %v409
    %v412 = vmul.f32 %v403, %v409
    %v413 = vld [vmem:[%s8] sm:$0x1]
    %v415 = vlaneseq
    %v416 = vshrl.u32 %v415, 7
    %v417 = vsub.s32 0, %v416
    %v418 = vrot.slane %v413, %v417
    %v420 = vadd.f32 %v411, %v418
    %v421 = vadd.f32 %v412, %v418
    %422 = vst.msk [vmem:[#allocation2] sm:$0xff] %vm376, %v420
    %423 = vst.msk [vmem:[#allocation2 + $0x8] sm:$0xff] %vm376, %v421
    // Predicated region
    $region38: #{tpu_custom_call.1} parent=1 // pred_check
      _
    $region39: #{tpu_custom_call.1} parent=1 // pred_check_branch
      %425 = sbr.rel (0) target = $region41
    $region40: #{tpu_custom_call.1} parent=1 // pred_region
      %s427 = ssub.s32 256, 256
      %428 = vsyncadd [#allocation3], %s427
      %s429 = sshll.u32 [#allocation2], 4
      %s430 = int_to_ptr.vmem [resolvable:$true] %s429
      %435 = dma.vmem_to_hbm [thread:$0]  %s430, 256, %s9, [#allocation3], 128, 128, 8
    $region41: #{tpu_custom_call.1} parent=1 // pred_fallthru
      _
    // Predicated region
    $region42: #{tpu_custom_call.1} parent=1 // pred_check
      _
    $region43: #{tpu_custom_call.1} parent=1 // pred_check_branch
      %437 = sbr.rel (0) target = $region45
    $region44: #{tpu_custom_call.1} parent=1 // pred_region
      %438 = dma.done [#allocation3], 256
    $region45: #{tpu_custom_call.1} parent=1 // pred_fallthru
      _
    %439 = vsyncpa [#allocation3], 1

</llo_original>
